<compile_context>
chip_gen: v7x
topology: tpu7x:2x2x1
jax: 0.10.0
libtpu: 0.0.40
codegen_flags: <defaults>
</compile_context>

<pallas_src>
import functools

import jax
import jax.numpy as jnp
from jax.experimental import pallas as pl
from jax.experimental.pallas import tpu as pltpu

GAMMA = 2             # module default
EPS = 1e-14
LANES = 128
ACC_ROWS = 32         # accumulator height: 4 vregs -> 4 independent add chains
TILE_ROWS_MAX = 4096  # 2 MiB f32 logits + 2 MiB f32 targets per grid step


def _round_up(x, m):
    return (x + m - 1) // m * m


def _focal_sum_kernel(x_ref, t_ref, out_ref, acc_ref, *, numel, tile_rows,
                      first_masked_blk, needs_mask):
    # x_ref : (tile_rows, 128) logits, caller dtype
    # t_ref : (tile_rows, 128) targets, caller dtype
    # out_ref: (ACC_ROWS, 128) f32 per-core partial-sum tile (lane-dense)
    # acc_ref: (ACC_ROWS, 128) f32 VMEM accumulator
    c = pl.program_id(0)
    k = pl.program_id(1)

    @pl.when(k == 0)
    def _():
        acc_ref[...] = jnp.zeros_like(acc_ref)

    x = x_ref[...].astype(jnp.float32)
    t = t_ref[...]

    # sigmoid as a single EUP push: p = 0.5*tanh(x/2) + 0.5
    p = 0.5 * jnp.tanh(0.5 * x) + 0.5
    one_m_p = 1.0 - p
    pos = t == 1.0
    q = jnp.where(pos, p, one_m_p)        # argument of the single log
    qc = jnp.where(pos, one_m_p, p)       # squared modulating factor
    # Un-negated elementwise focal loss (gamma=2); sign applied in the wrapper.
    loss = (qc * qc) * jnp.log(q + EPS)   # (tile_rows, LANES)

    def accum(vals):
        # (tile_rows,128) -> (tile_rows/32, 32, 128) is layout-free; summing
        # axis 0 gives 4 independent vreg accumulation chains (pure VPU adds).
        acc_ref[...] += jnp.sum(vals.reshape(-1, ACC_ROWS, LANES), axis=0)

    if needs_mask:
        blk = c * pl.num_programs(1) + k   # logical (unclamped) block index

        @pl.when(blk < first_masked_blk)
        def _():
            accum(loss)

        @pl.when(blk >= first_masked_blk)
        def _():
            # Ragged tail / phantom block: zero contributions past numel.
            rid = jax.lax.broadcasted_iota(jnp.int32, (tile_rows, LANES), 0)
            lid = jax.lax.broadcasted_iota(jnp.int32, (tile_rows, LANES), 1)
            flat = (blk * tile_rows + rid) * LANES + lid
            accum(jnp.where(flat < numel, loss, 0.0))
    else:
        accum(loss)

    @pl.when(k == pl.num_programs(1) - 1)
    def _():
        out_ref[...] = acc_ref[...]        # lane-dense (32,128) store per core


def bce_focal_loss(inputs, targets, gamma=GAMMA, reduction="mean"):
    assert gamma == 2, "kernel specialized for the module default gamma=2"
    # TODO(synk): reduction != 'mean' returns the unreduced per-element map in
    # the torch module; only the default 'mean' path is implemented here.
    assert reduction == "mean"
    assert inputs.shape == targets.shape and inputs.ndim >= 2
    numel = inputs.size
    dim1 = inputs.shape[1]
    assert numel < 2**31, "int32 flat-index validity mask"

    x_flat = inputs.reshape(-1)      # native dtype; upcast happens in-kernel
    t_flat = targets.reshape(-1)     # native dtype; compared to 1.0 in-kernel

    rows = pl.cdiv(numel, LANES)
    if rows <= ACC_ROWS:
        tile_rows = ACC_ROWS         # tiny input: one 32-row block
    else:
        # >= 2 blocks (so the v7x 2-TC axis has work), each <= TILE_ROWS_MAX
        # rows, rounded to ACC_ROWS.  Over-coverage is bounded by ~32 rows per
        # block and masked in-kernel (never padded).
        nb = max(2, pl.cdiv(rows, TILE_ROWS_MAX))
        tile_rows = min(TILE_ROWS_MAX, _round_up(pl.cdiv(rows, nb), ACC_ROWS))

    # Minimal pad only: lane completion (numel % 128) or tiny inputs. Large
    # inputs are never copied by jnp.pad.
    rows_alloc = max(rows, tile_rows)
    pad = rows_alloc * LANES - numel
    if pad > 0:
        x_flat = jnp.pad(x_flat, (0, pad))
        t_flat = jnp.pad(t_flat, (0, pad))

    x2d = x_flat.reshape(rows_alloc, LANES)
    t2d = t_flat.reshape(rows_alloc, LANES)

    nblocks = pl.cdiv(rows_alloc, tile_rows)
    ncores = 2 if nblocks >= 2 else 1      # v7x 2-TC split; harmless elsewhere
    steps_per_core = pl.cdiv(nblocks, ncores)
    total_blocks = ncores * steps_per_core

    if total_blocks == nblocks:
        def idx_map(c, k):
            return (c * steps_per_core + k, 0)
    else:
        # Odd split: the single phantom block re-reads the last real block
        # (legal DMA, no array pad); the kernel masks it to exactly zero.
        def idx_map(c, k):
            return (jnp.minimum(c * steps_per_core + k, nblocks - 1), 0)

    first_masked_blk = numel // (tile_rows * LANES)
    needs_mask = total_blocks * tile_rows * LANES > numel

    kernel = functools.partial(
        _focal_sum_kernel, numel=numel, tile_rows=tile_rows,
        first_masked_blk=first_masked_blk, needs_mask=needs_mask)

    partials = pl.pallas_call(
        kernel,
        out_shape=jax.ShapeDtypeStruct((ncores, ACC_ROWS, LANES), jnp.float32),
        grid_spec=pltpu.PrefetchScalarGridSpec(
            num_scalar_prefetch=0,
            grid=(ncores, steps_per_core),
            in_specs=[
                pl.BlockSpec((tile_rows, LANES), idx_map),
                pl.BlockSpec((tile_rows, LANES), idx_map),
            ],
            out_specs=pl.BlockSpec((None, ACC_ROWS, LANES),
                                   lambda c, k: (c, 0, 0)),
            scratch_shapes=[pltpu.VMEM((ACC_ROWS, LANES), jnp.float32)],
        ),
        compiler_params=pltpu.CompilerParams(
            dimension_semantics=("parallel", "arbitrary"),
        ),
    )(x2d, t2d)

    # mean(sum over dim 1) == total_sum * size(1) / numel; the minus sign
    # deferred from the kernel is applied here.
    return jnp.sum(partials) * (-float(dim1) / numel)


def _reference(inputs, targets, gamma=GAMMA):
    p = jax.nn.sigmoid(inputs.astype(jnp.float32))
    pos = (targets == 1.0).astype(jnp.float32)
    neg = 1.0 - pos
    pos_loss = -pos * (1.0 - p) ** gamma * jnp.log(p + EPS)
    neg_loss = -neg * p ** gamma * jnp.log(1.0 - p + EPS)
    return jnp.mean(jnp.sum(pos_loss + neg_loss, axis=1))


if __name__ == "__main__":
    key = jax.random.PRNGKey(0)
    k1, k2 = jax.random.split(key)
    # NCHW inputs, as the PyTorch module would typically see (B, C, H, W)
    shape = (2, 4, 16, 16)
    inputs = jax.random.normal(k1, shape, dtype=jnp.float32)
    targets = (jax.random.uniform(k2, shape) > 0.7).astype(jnp.float32)

    out = bce_focal_loss(inputs, targets)
    out = jax.block_until_ready(out)

    ref = _reference(inputs, targets)
    assert jnp.allclose(out, ref, rtol=1e-5, atol=1e-5), (out, ref)
    print("KERNEL_OK")
</pallas_src>

<mosaic_0001>
module attributes {stable_mosaic.version = 11 : i64} {
  func.func @_focal_sum_kernel(%arg0: i32, %arg1: i32, %arg2: memref<32x128xf32, #tpu.memory_space<vmem>>, %arg3: memref<32x128xf32, #tpu.memory_space<vmem>>, %arg4: memref<1x32x128xf32, #tpu.memory_space<vmem>>, %arg5: memref<32x128xf32, #tpu.memory_space<vmem>>) attributes {dimension_semantics = [#tpu.dimension_semantics<parallel>, #tpu.dimension_semantics<arbitrary>], iteration_bounds = array<i64: 1, 1>, scalar_prefetch = 0 : i64, scratch_operands = 1 : i64, tpu.core_type = #tpu.core_type<tc>, window_params = [{transform_indices = @transform_0, window_bounds = array<i64: 32, 128>}, {transform_indices = @transform_1, window_bounds = array<i64: 32, 128>}, {transform_indices = @transform_2, window_bounds = array<i64: 1, 32, 128>}]} {
    %c0_i32 = arith.constant 0 : i32
    %0 = arith.cmpi eq, %arg1, %c0_i32 : i32
    %1 = arith.extui %0 : i1 to i32
    %c0_i32_0 = arith.constant 0 : i32
    %2 = arith.cmpi ne, %1, %c0_i32_0 : i32
    scf.if %2 {
      %cst_15 = arith.constant 0.000000e+00 : f32
      %34 = vector.broadcast %cst_15 : f32 to vector<32x128xf32>
      %c0_16 = arith.constant 0 : index
      %c0_17 = arith.constant 0 : index
      %35 = vector.load %arg5[%c0_16, %c0_17] : memref<32x128xf32, #tpu.memory_space<vmem>>, vector<32x128xf32>
      tpu.vector_store %arg5[%c0_16, %c0_17], %34 {strides = array<i32>} : memref<32x128xf32, #tpu.memory_space<vmem>>, vector<32x128xf32>,
    } else {
    }
    %c0 = arith.constant 0 : index
    %c0_1 = arith.constant 0 : index
    %3 = vector.load %arg2[%c0, %c0_1] : memref<32x128xf32, #tpu.memory_space<vmem>>, vector<32x128xf32>
    %c0_2 = arith.constant 0 : index
    %c0_3 = arith.constant 0 : index
    %4 = vector.load %arg3[%c0_2, %c0_3] : memref<32x128xf32, #tpu.memory_space<vmem>>, vector<32x128xf32>
    %cst = arith.constant 5.000000e-01 : f32
    %5 = vector.broadcast %cst : f32 to vector<32x128xf32>
    %6 = arith.mulf %5, %3 : vector<32x128xf32>
    %7 = math.tanh %6 : vector<32x128xf32>
    %cst_4 = arith.constant 5.000000e-01 : f32
    %8 = vector.broadcast %cst_4 : f32 to vector<32x128xf32>
    %9 = arith.mulf %8, %7 : vector<32x128xf32>
    %cst_5 = arith.constant 5.000000e-01 : f32
    %10 = vector.broadcast %cst_5 : f32 to vector<32x128xf32>
    %11 = arith.addf %9, %10 : vector<32x128xf32>
    %cst_6 = arith.constant 1.000000e+00 : f32
    %12 = vector.broadcast %cst_6 : f32 to vector<32x128xf32>
    %13 = arith.subf %12, %11 : vector<32x128xf32>
    %cst_7 = arith.constant 1.000000e+00 : f32
    %14 = vector.broadcast %cst_7 : f32 to vector<32x128xf32>
    %15 = arith.cmpf oeq, %4, %14 : vector<32x128xf32>
    %16 = arith.select %15, %11, %13 : vector<32x128xi1>, vector<32x128xf32>
    %17 = arith.select %15, %13, %11 : vector<32x128xi1>, vector<32x128xf32>
    %18 = arith.mulf %17, %17 : vector<32x128xf32>
    %cst_8 = arith.constant 9.99999982E-15 : f32
    %19 = vector.broadcast %cst_8 : f32 to vector<32x128xf32>
    %20 = arith.addf %16, %19 : vector<32x128xf32>
    %21 = math.log %20 : vector<32x128xf32>
    %22 = arith.mulf %18, %21 : vector<32x128xf32>
    %c1_i32 = arith.constant 1 : i32
    %23 = arith.muli %arg0, %c1_i32 : i32
    %24 = arith.addi %23, %arg1 : i32
    %c0_i32_9 = arith.constant 0 : i32
    %25 = arith.cmpi slt, %24, %c0_i32_9 : i32
    %26 = arith.extui %25 : i1 to i32
    %c0_i32_10 = arith.constant 0 : i32
    %27 = arith.cmpi ne, %26, %c0_i32_10 : i32
    scf.if %27 {
      %c0_15 = arith.constant 0 : index
      %c0_16 = arith.constant 0 : index
      %34 = vector.load %arg5[%c0_15, %c0_16] : memref<32x128xf32, #tpu.memory_space<vmem>>, vector<32x128xf32>
      %35 = vector.shape_cast %22 : vector<32x128xf32> to vector<1x32x128xf32>
      %cst_17 = arith.constant dense<0.000000e+00> : vector<32x128xf32>
      %36 = vector.multi_reduction <add>, %35, %cst_17 [0] : vector<1x32x128xf32> to vector<32x128xf32>
      %37 = arith.addf %34, %36 : vector<32x128xf32>
      %c0_18 = arith.constant 0 : index
      %c0_19 = arith.constant 0 : index
      %38 = vector.load %arg5[%c0_18, %c0_19] : memref<32x128xf32, #tpu.memory_space<vmem>>, vector<32x128xf32>
      tpu.vector_store %arg5[%c0_18, %c0_19], %37 {strides = array<i32>} : memref<32x128xf32, #tpu.memory_space<vmem>>, vector<32x128xf32>,
    } else {
    }
    %c0_i32_11 = arith.constant 0 : i32
    %28 = arith.cmpi sge, %24, %c0_i32_11 : i32
    %29 = arith.extui %28 : i1 to i32
    %c0_i32_12 = arith.constant 0 : i32
    %30 = arith.cmpi ne, %29, %c0_i32_12 : i32
    scf.if %30 {
      %34 = tpu.iota {dimensions = array<i32: 0>} : vector<32x128xi32>
      %35 = tpu.iota {dimensions = array<i32: 1>} : vector<32x128xi32>
      %c32_i32 = arith.constant 32 : i32
      %36 = arith.muli %24, %c32_i32 : i32
      %37 = vector.broadcast %36 : i32 to vector<32x128xi32>
      %38 = arith.addi %37, %34 : vector<32x128xi32>
      %c128_i32 = arith.constant 128 : i32
      %39 = vector.broadcast %c128_i32 : i32 to vector<32x128xi32>
      %40 = arith.muli %38, %39 : vector<32x128xi32>
      %41 = arith.addi %40, %35 : vector<32x128xi32>
      %c2048_i32 = arith.constant 2048 : i32
      %42 = vector.broadcast %c2048_i32 : i32 to vector<32x128xi32>
      %43 = arith.cmpi slt, %41, %42 : vector<32x128xi32>
      %cst_15 = arith.constant 0.000000e+00 : f32
      %44 = vector.broadcast %cst_15 : f32 to vector<32x128xf32>
      %45 = arith.select %43, %22, %44 : vector<32x128xi1>, vector<32x128xf32>
      %c0_16 = arith.constant 0 : index
      %c0_17 = arith.constant 0 : index
      %46 = vector.load %arg5[%c0_16, %c0_17] : memref<32x128xf32, #tpu.memory_space<vmem>>, vector<32x128xf32>
      %47 = vector.shape_cast %45 : vector<32x128xf32> to vector<1x32x128xf32>
      %cst_18 = arith.constant dense<0.000000e+00> : vector<32x128xf32>
      %48 = vector.multi_reduction <add>, %47, %cst_18 [0] : vector<1x32x128xf32> to vector<32x128xf32>
      %49 = arith.addf %46, %48 : vector<32x128xf32>
      %c0_19 = arith.constant 0 : index
      %c0_20 = arith.constant 0 : index
      %50 = vector.load %arg5[%c0_19, %c0_20] : memref<32x128xf32, #tpu.memory_space<vmem>>, vector<32x128xf32>
      tpu.vector_store %arg5[%c0_19, %c0_20], %49 {strides = array<i32>} : memref<32x128xf32, #tpu.memory_space<vmem>>, vector<32x128xf32>,
    } else {
    }
    %c0_i32_13 = arith.constant 0 : i32
    %31 = arith.cmpi eq, %arg1, %c0_i32_13 : i32
    %32 = arith.extui %31 : i1 to i32
    %c0_i32_14 = arith.constant 0 : i32
    %33 = arith.cmpi ne, %32, %c0_i32_14 : i32
    scf.if %33 {
      %c0_15 = arith.constant 0 : index
      %c0_16 = arith.constant 0 : index
      %34 = vector.load %arg5[%c0_15, %c0_16] : memref<32x128xf32, #tpu.memory_space<vmem>>, vector<32x128xf32>
      %c0_17 = arith.constant 0 : index
      %c0_18 = arith.constant 0 : index
      %c0_19 = arith.constant 0 : index
      %35 = vector.load %arg4[%c0_17, %c0_18, %c0_19] : memref<1x32x128xf32, #tpu.memory_space<vmem>>, vector<1x32x128xf32>
      %36 = vector.shape_cast %35 : vector<1x32x128xf32> to vector<32x128xf32>
      %37 = vector.shape_cast %34 : vector<32x128xf32> to vector<1x32x128xf32>
      tpu.vector_store %arg4[%c0_17, %c0_18, %c0_19], %37 {strides = array<i32>} : memref<1x32x128xf32, #tpu.memory_space<vmem>>, vector<1x32x128xf32>,
    } else {
    }
    return
  }
  func.func @transform_0(%arg0: i32, %arg1: i32) -> (i32, i32) {
    %c1_i32 = arith.constant 1 : i32
    %0 = arith.muli %arg0, %c1_i32 : i32
    %1 = arith.addi %0, %arg1 : i32
    %c0_i32 = arith.constant 0 : i32
    %c0_i32_0 = arith.constant 0 : i32
    return %1, %c0_i32 : i32, i32
  }
  func.func @transform_1(%arg0: i32, %arg1: i32) -> (i32, i32) {
    %c1_i32 = arith.constant 1 : i32
    %0 = arith.muli %arg0, %c1_i32 : i32
    %1 = arith.addi %0, %arg1 : i32
    %c0_i32 = arith.constant 0 : i32
    %c0_i32_0 = arith.constant 0 : i32
    return %1, %c0_i32 : i32, i32
  }
  func.func @transform_2(%arg0: i32, %arg1: i32) -> (i32, i32, i32) {
    %c0_i32 = arith.constant 0 : i32
    %c0_i32_0 = arith.constant 0 : i32
    %c0_i32_1 = arith.constant 0 : i32
    return %arg0, %c0_i32, %c0_i32_0 : i32, i32, i32
  }
}

</mosaic_0001>

<llo_original>
// kernel: tpu_custom_call.1
$region0: #{tpu_custom_call.1}
  #allocation0 [shape = 'u32[]', space=smem, size = 0x4, offset = 0x4, fixed_abs, tag = 'smem constant byte address 0x4 - core index']
  #allocation1 [shape = 'u32[144,128]{1,0:T(1,128)}', space=vmem, size = 0x12000, scoped, tag = 'internal scratch']
  #allocation2 [shape = 'f32[32,128]{1,0:T(8,128)}', space=vmem, size = 0x4000, scoped, tag = 'scratch operand']
  %s0 = inlined_call_operand.hbm [shape: f32[32,128], index: 0, kind: input, shape index: {}]
  %s1 = inlined_call_operand.hbm [shape: f32[32,128], index: 1, kind: input, shape index: {}]
  %s2 = inlined_call_operand.hbm [shape: f32[1,32,128], index: 2, kind: output, shape index: {}]
  %s3 = sld [smem:[#allocation0]]
  $region42: #{tpu_custom_call.1} parent=0
    _
  %s5 = ssub.s32 1, %s3
  %s6 = scalar_select 0, %s5, %s3
  $region1: #{tpu_custom_call.1} parent=0
    #allocation3 [shape = 'u8[16384]{0}', space=vmem, size = 0x4000, scoped, tag = 'input window, operand 0, single buffered']
    #allocation4 [shape = 's32[1]{0}', space=sflag, size = 0x4, scoped, tag = 'scoped memory for tpu_custom_call.1']
    #allocation5 [shape = 's32[1]{0}', space=sflag, size = 0x4, scoped, tag = 'scoped memory for tpu_custom_call.1']
    #allocation6 [shape = 'u8[16384]{0}', space=vmem, size = 0x4000, scoped, tag = 'input window, operand 1, single buffered']
    #allocation7 [shape = 's32[1]{0}', space=sflag, size = 0x4, scoped, tag = 'scoped memory for tpu_custom_call.1']
    #allocation8 [shape = 'u8[16384]{0}', space=vmem, size = 0x4000, scoped, tag = 'output window, operand 0, single buffered']
    %7 = vsyncpa [#allocation4], 0
    %8 = vsyncpa [#allocation7], 0
    %9 = vsyncpa [#allocation5], 0
    // Predicated region
    $region2: #{tpu_custom_call.1} parent=1 // pred_check
      _
    $region3: #{tpu_custom_call.1} parent=1 // pred_check_branch
      %11 = sbr.rel (0) target = $region5
    $region4: #{tpu_custom_call.1} parent=1 // pred_region
      %s12 = sadd.s32 0, 0
      %s13 = smul.u32 4, %s12
      %s15 = ssub.s32 512, 512
      %16 = vsyncadd [#allocation4], %s15
      %s17 = smul.addr %s13, 128
      %s18 = scalar_lea.hbm %s0, %s17
      %s19 = sshll.u32 [#allocation3], 4
      %s20 = int_to_ptr.vmem [resolvable:$true] %s19
      %25 = dma.hbm_to_vmem [thread:$0]  %s18, 512, %s20, [#allocation4], 128, 128, 8
    $region5: #{tpu_custom_call.1} parent=1 // pred_fallthru
      _
    // Predicated region
    $region6: #{tpu_custom_call.1} parent=1 // pred_check
      _
    $region7: #{tpu_custom_call.1} parent=1 // pred_check_branch
      %27 = sbr.rel (0) target = $region9
    $region8: #{tpu_custom_call.1} parent=1 // pred_region
      %s28 = sadd.s32 0, 0
      %s29 = smul.u32 4, %s28
      %s31 = ssub.s32 512, 512
      %32 = vsyncadd [#allocation7], %s31
      %s33 = smul.addr %s29, 128
      %s34 = scalar_lea.hbm %s1, %s33
      %s35 = sshll.u32 [#allocation6], 4
      %s36 = int_to_ptr.vmem [resolvable:$true] %s35
      %41 = dma.hbm_to_vmem [thread:$0]  %s34, 512, %s36, [#allocation7], 128, 128, 8
    $region9: #{tpu_custom_call.1} parent=1 // pred_fallthru
      _
    // Predicated region
    $region10: #{tpu_custom_call.1} parent=1 // pred_check
      _
    $region11: #{tpu_custom_call.1} parent=1 // pred_check_branch
      %43 = sbr.rel (0) target = $region13
    $region12: #{tpu_custom_call.1} parent=1 // pred_region
      %44 = dma.done [#allocation4], 512
    $region13: #{tpu_custom_call.1} parent=1 // pred_fallthru
      _
    // Predicated region
    $region14: #{tpu_custom_call.1} parent=1 // pred_check
      _
    $region15: #{tpu_custom_call.1} parent=1 // pred_check_branch
      %46 = sbr.rel (0) target = $region17
    $region16: #{tpu_custom_call.1} parent=1 // pred_region
      %47 = dma.done [#allocation7], 512
    $region17: #{tpu_custom_call.1} parent=1 // pred_fallthru
      _
    %s48 = sadd.s32 0, 0
    %s49 = smul.u32 4, %s48
    %s50 = sadd.s32 0, 0
    %s51 = smul.u32 4, %s50
    %p52 = scmp.eq.s32.totalorder 0, 0
    // Predicated region
    $region18: #{tpu_custom_call.1} parent=1 // pred_check
      %p53 = pneg %p52
    $region19: #{tpu_custom_call.1} parent=1 // pred_check_branch
      %55 = sbr.rel (%p53) target = $region21
    $region20: #{tpu_custom_call.1} parent=1 // pred_region
      %56 = vst [vmem:[#allocation2] sm:$0xff] 0.0
      %57 = vst [vmem:[#allocation2 + $0x8] sm:$0xff] 0.0
      %58 = vst [vmem:[#allocation2 + $0x10] sm:$0xff] 0.0
      %59 = vst [vmem:[#allocation2 + $0x18] sm:$0xff] 0.0
    $region21: #{tpu_custom_call.1} parent=1 // pred_fallthru
      _
    %v60 = vld [vmem:[#allocation3] sm:$0xff]
    %v61 = vld [vmem:[#allocation3 + $0x8] sm:$0xff]
    %v62 = vld [vmem:[#allocation3 + $0x10] sm:$0xff]
    %v63 = vld [vmem:[#allocation3 + $0x18] sm:$0xff]
    %v64 = vld [vmem:[#allocation6] sm:$0xff]
    %v65 = vld [vmem:[#allocation6 + $0x8] sm:$0xff]
    %v66 = vld [vmem:[#allocation6 + $0x10] sm:$0xff]
    %v67 = vld [vmem:[#allocation6 + $0x18] sm:$0xff]
    %v68 = vmul.f32 %v60, 0.5
    %v69 = vmul.f32 %v61, 0.5
    %v70 = vmul.f32 %v62, 0.5
    %v71 = vmul.f32 %v63, 0.5
    %v72 = vtanh.pop %v68
    %v73 = vtanh.pop %v69
    %v74 = vtanh.pop %v70
    %v75 = vtanh.pop %v71
    %v76 = vmul.f32 %v72, 0.5
    %v77 = vmul.f32 %v73, 0.5
    %v78 = vmul.f32 %v74, 0.5
    %v79 = vmul.f32 %v75, 0.5
    %v80 = vadd.f32 %v76, 0.5
    %v81 = vadd.f32 %v77, 0.5
    %v82 = vadd.f32 %v78, 0.5
    %v83 = vadd.f32 %v79, 0.5
    %v84 = vsub.f32 1.0, %v80
    %v85 = vsub.f32 1.0, %v81
    %v86 = vsub.f32 1.0, %v82
    %v87 = vsub.f32 1.0, %v83
    %vm88 = vcmp.eq.f32.partialorder %v64, 1.0
    %vm89 = vcmp.eq.f32.partialorder %v65, 1.0
    %vm90 = vcmp.eq.f32.partialorder %v66, 1.0
    %vm91 = vcmp.eq.f32.partialorder %v67, 1.0
    %v92 = vsel %vm88, %v80, %v84
    %v93 = vsel %vm89, %v81, %v85
    %v94 = vsel %vm90, %v82, %v86
    %v95 = vsel %vm91, %v83, %v87
    %v96 = vsel %vm88, %v84, %v80
    %v97 = vsel %vm89, %v85, %v81
    %v98 = vsel %vm90, %v86, %v82
    %v99 = vsel %vm91, %v87, %v83
    %v100 = vmul.f32 %v96, %v96
    %v101 = vmul.f32 %v97, %v97
    %v102 = vmul.f32 %v98, %v98
    %v103 = vmul.f32 %v99, %v99
    %v104 = vadd.f32 %v92, 1e-14
    %v105 = vadd.f32 %v93, 1e-14
    %v106 = vadd.f32 %v94, 1e-14
    %v107 = vadd.f32 %v95, 1e-14
    %v108 = vlog2.pop %v104
    %v109 = vmul.f32 %v108, 0.6931472
    %v110 = vlog2.pop %v105
    %v111 = vmul.f32 %v110, 0.6931472
    %v112 = vlog2.pop %v106
    %v113 = vmul.f32 %v112, 0.6931472
    %v114 = vlog2.pop %v107
    %v115 = vmul.f32 %v114, 0.6931472
    %v116 = vmul.f32 %v100, %v109
    %v117 = vmul.f32 %v101, %v111
    %v118 = vmul.f32 %v102, %v113
    %v119 = vmul.f32 %v103, %v115
    %s120 = sadd.s32 0, 0
    %p121 = scmp.lt.s32.totalorder %s120, 0
    // Predicated region
    $region22: #{tpu_custom_call.1} parent=1 // pred_check
      %p122 = pneg %p121
    $region23: #{tpu_custom_call.1} parent=1 // pred_check_branch
      %124 = sbr.rel (%p122) target = $region25
    $region24: #{tpu_custom_call.1} parent=1 // pred_region
      %v125 = vld [vmem:[#allocation2] sm:$0xff]
      %v126 = vld [vmem:[#allocation2 + $0x8] sm:$0xff]
      %v127 = vld [vmem:[#allocation2 + $0x10] sm:$0xff]
      %v128 = vld [vmem:[#allocation2 + $0x18] sm:$0xff]
      %v129 = vadd.f32 %v116, 0.0
      %v130 = vadd.f32 %v117, 0.0
      %v131 = vadd.f32 %v118, 0.0
      %v132 = vadd.f32 %v119, 0.0
      %v133 = vadd.f32 %v125, %v129
      %v134 = vadd.f32 %v126, %v130
      %v135 = vadd.f32 %v127, %v131
      %v136 = vadd.f32 %v128, %v132
      %137 = vst [vmem:[#allocation2] sm:$0xff] %v133
      %138 = vst [vmem:[#allocation2 + $0x8] sm:$0xff] %v134
      %139 = vst [vmem:[#allocation2 + $0x10] sm:$0xff] %v135
      %140 = vst [vmem:[#allocation2 + $0x18] sm:$0xff] %v136
    $region25: #{tpu_custom_call.1} parent=1 // pred_fallthru
      _
    %p141 = scmp.ge.s32.totalorder %s120, 0
    // Predicated region
    $region26: #{tpu_custom_call.1} parent=1 // pred_check
      %p142 = pneg %p141
    $region27: #{tpu_custom_call.1} parent=1 // pred_check_branch
      %144 = sbr.rel (%p142) target = $region29
    $region28: #{tpu_custom_call.1} parent=1 // pred_region
      %v145 = vlaneseq
      %v146 = vshrl.u32 %v145, 7
      %v147 = vadd.s32 %v146, 8
      %v148 = vadd.s32 %v146, 16
      %v149 = vadd.s32 %v146, 24
      %v150 = vlaneseq
      %v151 = vand.u32 %v150, 127
      %s152 = smul.u32 %s120, 32
      %v153 = vstv %s152
      %v154 = vadd.s32 %v153, %v146
      %v155 = vadd.s32 %v153, %v147
      %v156 = vadd.s32 %v153, %v148
      %v157 = vadd.s32 %v153, %v149
      %v158 = vmul.u32 %v154, 128
      %v159 = vmul.u32 %v155, 128
      %v160 = vmul.u32 %v156, 128
      %v161 = vmul.u32 %v157, 128
      %v162 = vadd.s32 %v158, %v151
      %v163 = vadd.s32 %v159, %v151
      %v164 = vadd.s32 %v160, %v151
      %v165 = vadd.s32 %v161, %v151
      %vm166 = vcmp.lt.s32.totalorder %v162, 2048
      %vm167 = vcmp.lt.s32.totalorder %v163, 2048
      %vm168 = vcmp.lt.s32.totalorder %v164, 2048
      %vm169 = vcmp.lt.s32.totalorder %v165, 2048
      %v170 = vsel %vm166, %v116, 0.0
      %v171 = vsel %vm167, %v117, 0.0
      %v172 = vsel %vm168, %v118, 0.0
      %v173 = vsel %vm169, %v119, 0.0
      %v174 = vld [vmem:[#allocation2] sm:$0xff]
      %v175 = vld [vmem:[#allocation2 + $0x8] sm:$0xff]
      %v176 = vld [vmem:[#allocation2 + $0x10] sm:$0xff]
      %v177 = vld [vmem:[#allocation2 + $0x18] sm:$0xff]
      %v178 = vadd.f32 %v170, 0.0
      %v179 = vadd.f32 %v171, 0.0
      %v180 = vadd.f32 %v172, 0.0
      %v181 = vadd.f32 %v173, 0.0
      %v182 = vadd.f32 %v174, %v178
      %v183 = vadd.f32 %v175, %v179
      %v184 = vadd.f32 %v176, %v180
      %v185 = vadd.f32 %v177, %v181
      %186 = vst [vmem:[#allocation2] sm:$0xff] %v182
      %187 = vst [vmem:[#allocation2 + $0x8] sm:$0xff] %v183
      %188 = vst [vmem:[#allocation2 + $0x10] sm:$0xff] %v184
      %189 = vst [vmem:[#allocation2 + $0x18] sm:$0xff] %v185
    $region29: #{tpu_custom_call.1} parent=1 // pred_fallthru
      _
    // Predicated region
    $region30: #{tpu_custom_call.1} parent=1 // pred_check
      %p190 = pneg %p52
    $region31: #{tpu_custom_call.1} parent=1 // pred_check_branch
      %192 = sbr.rel (%p190) target = $region33
    $region32: #{tpu_custom_call.1} parent=1 // pred_region
      %v193 = vld [vmem:[#allocation2] sm:$0xff]
      %v194 = vld [vmem:[#allocation2 + $0x8] sm:$0xff]
      %v195 = vld [vmem:[#allocation2 + $0x10] sm:$0xff]
      %v196 = vld [vmem:[#allocation2 + $0x18] sm:$0xff]
      %197 = vst [vmem:[#allocation8] sm:$0xff] %v193
      %198 = vst [vmem:[#allocation8 + $0x8] sm:$0xff] %v194
      %199 = vst [vmem:[#allocation8 + $0x10] sm:$0xff] %v195
      %200 = vst [vmem:[#allocation8 + $0x18] sm:$0xff] %v196
    $region33: #{tpu_custom_call.1} parent=1 // pred_fallthru
      _
    // Predicated region
    $region34: #{tpu_custom_call.1} parent=1 // pred_check
      _
    $region35: #{tpu_custom_call.1} parent=1 // pred_check_branch
      %202 = sbr.rel (0) target = $region37
    $region36: #{tpu_custom_call.1} parent=1 // pred_region
      %s204 = ssub.s32 512, 512
      %205 = vsyncadd [#allocation5], %s204
      %s206 = sshll.u32 [#allocation8], 4
      %s207 = int_to_ptr.vmem [resolvable:$true] %s206
      %212 = dma.vmem_to_hbm [thread:$0]  %s207, 512, %s2, [#allocation5], 128, 128, 8
    $region37: #{tpu_custom_call.1} parent=1 // pred_fallthru
      _
    // Predicated region
    $region38: #{tpu_custom_call.1} parent=1 // pred_check
      _
    $region39: #{tpu_custom_call.1} parent=1 // pred_check_branch
      %214 = sbr.rel (0) target = $region41
    $region40: #{tpu_custom_call.1} parent=1 // pred_region
      %215 = dma.done [#allocation5], 512
    $region41: #{tpu_custom_call.1} parent=1 // pred_fallthru
      _
    %216 = vsyncpa [#allocation4], 1
    %217 = vsyncpa [#allocation7], 1
    %218 = vsyncpa [#allocation5], 1

</llo_original>
